<compile_context>
chip_gen: v6e
topology: v6e:2x2x1
jax: 0.10.0
libtpu: 0.0.40
codegen_flags: <defaults>
</compile_context>

<pallas_src>
import functools

import jax
import jax.numpy as jnp
import numpy as np
from jax.experimental import pallas as pl
from jax.experimental.pallas import tpu as pltpu

SUBLANE = 8  # sublane granule (second-to-last dim)


def _round_up(x, m):
    return ((x + m - 1) // m) * m


def _encoder_kernel(x_ref, w_ref, b_ref, o_ref):
    # x_ref: (tm, Cin)  w_ref: (Cin, Cout)  b_ref: (1, Cout)  o_ref: (tm, Cout)
    y = jnp.dot(x_ref[...], w_ref[...], preferred_element_type=jnp.float32)
    y = y + b_ref[...]                       # bias broadcast over batch rows
    o_ref[...] = jnp.maximum(y, 0.0).astype(o_ref.dtype)


def prepare_params(w_torch_layout, b):
    """One-time layout conversion (do NOT call per forward step).

    w_torch_layout: (Cout, Cin) as nn.Linear stores it; b: (Cout,).
    Returns weight as (Cin, Cout) and bias as (1, Cout).  No padding: the
    kernel is HBM-bound and padding only inflates traffic.
    """
    w_t = jnp.asarray(w_torch_layout).T            # (Cin, Cout)
    b2 = jnp.asarray(b).reshape(1, -1)             # (1, Cout)
    return w_t, b2


@functools.partial(jax.jit, static_argnames=("tm_max",))
def encoder_forward(x, w_t, b2, *, tm_max=2048):
    """x: (B, Cin) f32, w_t: (Cin, Cout), b2: (1, Cout) -> (B, Cout) f32."""
    B, cin = x.shape
    cout = w_t.shape[1]

    # Batch tile: for small B take the whole batch in one block; otherwise
    # split into >=2 grid steps (so both v7x TensorCores get work via the
    # "parallel" axis), rounded to the 8-row sublane granule and capped at
    # tm_max.  The partial tail block (B % tm != 0) is masked by Pallas, so no
    # input padding or output slicing is needed.  VMEM is nowhere near a limit
    # at these channel counts on v5e/v6e/v7x even at tm=2048.
    if B <= SUBLANE:
        tm = B
    else:
        tm = min(tm_max, _round_up(pl.cdiv(B, 2), SUBLANE))
    grid = (pl.cdiv(B, tm),)

    out = pl.pallas_call(
        _encoder_kernel,
        out_shape=jax.ShapeDtypeStruct((B, cout), x.dtype),
        grid_spec=pltpu.PrefetchScalarGridSpec(
            num_scalar_prefetch=0,
            grid=grid,
            in_specs=[
                pl.BlockSpec((tm, cin), lambda i: (i, 0)),     # batch-tiled x
                pl.BlockSpec((cin, cout), lambda i: (0, 0)),   # resident weight
                pl.BlockSpec((1, cout), lambda i: (0, 0)),     # resident bias
            ],
            out_specs=pl.BlockSpec((tm, cout), lambda i: (i, 0)),
        ),
        compiler_params=pltpu.CompilerParams(
            dimension_semantics=("parallel",),   # shard batch across TCs (v7x)
        ),
    )(x, w_t, b2)

    return out


def xavier_uniform(key, fan_out, fan_in, dtype=jnp.float32):
    # Matches torch.nn.init.xavier_uniform_ bound for a (fan_out, fan_in) weight.
    bound = float(np.sqrt(6.0 / (fan_in + fan_out)))
    return jax.random.uniform(key, (fan_out, fan_in), dtype, -bound, bound)


if __name__ == "__main__":
    key = jax.random.PRNGKey(0)
    k_x, k_w = jax.random.split(key)

    batch = 8
    in_channel = 32
    out_channel = 4
    hidden_channel = 32  # fc1/fc2 are defined in __init__ but unused in forward.

    # Encoder.restart semantics: xavier weights, zero biases. Only fc is used.
    w = xavier_uniform(k_w, out_channel, in_channel)   # (Cout, Cin), torch layout
    b = jnp.zeros((out_channel,), jnp.float32)

    # One-time parameter layout conversion (kept out of the per-call hot path).
    w_t, b2 = prepare_params(w, b)

    x = jax.random.normal(k_x, (batch, in_channel), jnp.float32)

    out = jax.block_until_ready(encoder_forward(x, w_t, b2))

    # Reference check in plain JAX.
    ref = jnp.maximum(x @ w.T + b, 0.0)
    np.testing.assert_allclose(np.asarray(out), np.asarray(ref), rtol=1e-5, atol=1e-5)
    assert out.shape == (batch, out_channel)

    print("KERNEL_OK")
</pallas_src>

<mosaic_0001>
module attributes {stable_mosaic.version = 11 : i64} {
  func.func @_encoder_kernel(%arg0: i32, %arg1: memref<8x32xf32, #tpu.memory_space<vmem>>, %arg2: memref<32x4xf32, #tpu.memory_space<vmem>>, %arg3: memref<1x4xf32, #tpu.memory_space<vmem>>, %arg4: memref<8x4xf32, #tpu.memory_space<vmem>>) attributes {dimension_semantics = [#tpu.dimension_semantics<parallel>], iteration_bounds = array<i64: 1>, scalar_prefetch = 0 : i64, scratch_operands = 0 : i64, tpu.core_type = #tpu.core_type<tc>, window_params = [{transform_indices = @transform_0, window_bounds = array<i64: 8, 32>}, {pipeline_mode = #tpu.pipeline_mode<synchronous>, transform_indices = @transform_1, window_bounds = array<i64: 32, 4>}, {pipeline_mode = #tpu.pipeline_mode<synchronous>, transform_indices = @transform_2, window_bounds = array<i64: 1, 4>}, {transform_indices = @transform_3, window_bounds = array<i64: 8, 4>}]} {
    %c0 = arith.constant 0 : index
    %c0_0 = arith.constant 0 : index
    %0 = vector.load %arg1[%c0, %c0_0] : memref<8x32xf32, #tpu.memory_space<vmem>>, vector<8x32xf32>
    %c0_1 = arith.constant 0 : index
    %c0_2 = arith.constant 0 : index
    %1 = vector.load %arg2[%c0_1, %c0_2] : memref<32x4xf32, #tpu.memory_space<vmem>>, vector<32x4xf32>
    %cst = arith.constant dense<0.000000e+00> : vector<8x4xf32>
    %2 = tpu.matmul %0, %1, %cst {dimension_numbers = #tpu.dot_dimension_numbers<[1], [0], [0], [1], [0, 0, 1, 1], [], []>} : vector<8x32xf32>, vector<32x4xf32>, vector<8x4xf32> -> vector<8x4xf32>
    %c0_3 = arith.constant 0 : index
    %c0_4 = arith.constant 0 : index
    %3 = vector.load %arg3[%c0_3, %c0_4] : memref<1x4xf32, #tpu.memory_space<vmem>>, vector<1x4xf32>
    %4 = vector.broadcast %3 : vector<1x4xf32> to vector<8x4xf32>
    %5 = arith.addf %2, %4 : vector<8x4xf32>
    %cst_5 = arith.constant 0.000000e+00 : f32
    %6 = vector.broadcast %cst_5 : f32 to vector<8x4xf32>
    %7 = arith.maximumf %5, %6 : vector<8x4xf32>
    %c0_6 = arith.constant 0 : index
    %c0_7 = arith.constant 0 : index
    %8 = vector.load %arg4[%c0_6, %c0_7] : memref<8x4xf32, #tpu.memory_space<vmem>>, vector<8x4xf32>
    tpu.vector_store %arg4[%c0_6, %c0_7], %7 {strides = array<i32>} : memref<8x4xf32, #tpu.memory_space<vmem>>, vector<8x4xf32>,
    return
  }
  func.func @transform_0(%arg0: i32) -> (i32, i32) {
    %c0_i32 = arith.constant 0 : i32
    %c0_i32_0 = arith.constant 0 : i32
    return %arg0, %c0_i32 : i32, i32
  }
  func.func @transform_1(%arg0: i32) -> (i32, i32) {
    %c0_i32 = arith.constant 0 : i32
    %c0_i32_0 = arith.constant 0 : i32
    %c0_i32_1 = arith.constant 0 : i32
    return %c0_i32, %c0_i32_0 : i32, i32
  }
  func.func @transform_2(%arg0: i32) -> (i32, i32) {
    %c0_i32 = arith.constant 0 : i32
    %c0_i32_0 = arith.constant 0 : i32
    %c0_i32_1 = arith.constant 0 : i32
    return %c0_i32, %c0_i32_0 : i32, i32
  }
  func.func @transform_3(%arg0: i32) -> (i32, i32) {
    %c0_i32 = arith.constant 0 : i32
    %c0_i32_0 = arith.constant 0 : i32
    return %arg0, %c0_i32 : i32, i32
  }
}

</mosaic_0001>

<llo_original>
// kernel: encoder_forward.1
$region0: #{encoder_forward.1}
  #allocation0 [shape = 'u32[]', space=smem, size = 0x4, offset = 0x4, fixed_abs, tag = 'smem constant byte address 0x4 - core index']
  #allocation1 [shape = 'u32[144,128]{1,0:T(1,128)}', space=vmem, size = 0x12000, scoped, tag = 'internal scratch']
  %s0 = inlined_call_operand.vmem [shape: f32[8,32], index: 0, kind: input, shape index: {}]
  %s1 = inlined_call_operand.vmem [shape: f32[32,4], index: 1, kind: input, shape index: {}]
  %s2 = inlined_call_operand.vmem [shape: f32[1,4], index: 2, kind: input, shape index: {}]
  %s3 = inlined_call_operand.vmem [shape: f32[8,4], index: 3, kind: output, shape index: {}]
  %s4 = sld [smem:[#allocation0]]
  $region22: #{encoder_forward.1} parent=0
    _
  %s6 = ssub.s32 1, %s4
  %s7 = scalar_select 0, %s6, %s4
  // Predicated region
  $region2: #{encoder_forward.1} parent=0 // pred_check
    _
  $region3: #{encoder_forward.1} parent=0 // pred_check_branch
    %9 = sbr.rel (0) target = $region5
  $region4: #{encoder_forward.1} parent=0 // pred_region
    _
  $region5: #{encoder_forward.1} parent=0 // pred_fallthru
    _
  // Predicated region
  $region6: #{encoder_forward.1} parent=0 // pred_check
    _
  $region7: #{encoder_forward.1} parent=0 // pred_check_branch
    %11 = sbr.rel (0) target = $region9
  $region8: #{encoder_forward.1} parent=0 // pred_region
    _
  $region9: #{encoder_forward.1} parent=0 // pred_fallthru
    _
  // Predicated region
  $region10: #{encoder_forward.1} parent=0 // pred_check
    _
  $region11: #{encoder_forward.1} parent=0 // pred_check_branch
    %13 = sbr.rel (0) target = $region13
  $region12: #{encoder_forward.1} parent=0 // pred_region
    _
  $region13: #{encoder_forward.1} parent=0 // pred_fallthru
    _
  %v14 = vld [vmem:[%s0] sm:$0xff]
  %v15 = vld [vmem:[%s1] sm:$0xff]
  %v16 = vld [vmem:[%s1 + $0x8] sm:$0xff]
  %v17 = vld [vmem:[%s1 + $0x10] sm:$0xff]
  %v18 = vld [vmem:[%s1 + $0x18] sm:$0xff]
  %v19 = vld [vmem:[%s2] sm:$0x1]
  %v21 = vlaneseq
  %v22 = vshrl.u32 %v21, 7
  %v23 = vsub.s32 0, %v22
  %v24 = vrot.slane %v19, %v23
  %vm26 = vcmask 261120
  %v28 = vsel %vm26, %v14, 0
  %30 = vmatprep.subr.mxu0 0.0
  %31 = vmatpush1.msra.mxu0 0.0
  %32 = vmatprep.subr.mxu0 0.0
  %33 = vmatpush1.msra.mxu0 0.0
  %34 = vmatprep.subr.mxu0 0.0
  %35 = vmatpush1.msra.mxu0 0.0
  %36 = vmatprep.subr.mxu0 0.0
  %37 = vmatpush1.msra.mxu0 0.0
  %38 = vmatprep.subr.mxu0 0.0
  %39 = vmatpush1.msra.mxu0 0.0
  %40 = vmatprep.subr.mxu0 0.0
  %41 = vmatpush1.msra.mxu0 0.0
  %42 = vmatprep.subr.mxu0 0.0
  %43 = vmatpush1.msra.mxu0 0.0
  %44 = vmatprep.subr.mxu0 0.0
  %45 = vmatpush1.msra.mxu0 0.0
  %46 = vmatprep.subr.mxu0 0.0
  %47 = vmatpush1.msra.mxu0 0.0
  %48 = vmatprep.subr.mxu0 0.0
  %49 = vmatpush1.msra.mxu0 0.0
  %50 = vmatprep.subr.mxu0 0.0
  %51 = vmatpush1.msra.mxu0 0.0
  %52 = vmatprep.subr.mxu0 0.0
  %53 = vmatpush1.msra.mxu0 0.0
  %54 = vmatprep.subr.mxu0 0.0
  %55 = vmatpush1.msra.mxu0 %v18
  %56 = vmatprep.subr.mxu0 0.0
  %57 = vmatpush1.msra.mxu0 %v17
  %58 = vmatprep.subr.mxu0 0.0
  %59 = vmatpush1.msra.mxu0 %v16
  %60 = vmatprep.subr.mxu0 0.0
  %61 = vmatpush1.msra.mxu0 %v15
  %62 = vmatprep.subr.mxu0 0.0
  %63 = vmatpush2.msra.mxu0 0.0
  %64 = vmatprep.subr.mxu0 0.0
  %65 = vmatpush2.msra.mxu0 0.0
  %66 = vmatprep.subr.mxu0 0.0
  %67 = vmatpush2.msra.mxu0 0.0
  %68 = vmatprep.subr.mxu0 0.0
  %69 = vmatpush2.msra.mxu0 0.0
  %70 = vmatprep.subr.mxu0 0.0
  %71 = vmatpush2.msra.mxu0 0.0
  %72 = vmatprep.subr.mxu0 0.0
  %73 = vmatpush2.msra.mxu0 0.0
  %74 = vmatprep.subr.mxu0 0.0
  %75 = vmatpush2.msra.mxu0 0.0
  %76 = vmatprep.subr.mxu0 0.0
  %77 = vmatpush2.msra.mxu0 0.0
  %78 = vmatprep.subr.mxu0 0.0
  %79 = vmatpush2.msra.mxu0 0.0
  %80 = vmatprep.subr.mxu0 0.0
  %81 = vmatpush2.msra.mxu0 0.0
  %82 = vmatprep.subr.mxu0 0.0
  %83 = vmatpush2.msra.mxu0 0.0
  %84 = vmatprep.subr.mxu0 0.0
  %85 = vmatpush2.msra.mxu0 0.0
  %86 = vmatprep.subr.mxu0 0.0
  %87 = vmatpush2.msra.mxu0 0.0
  %88 = vmatprep.subr.mxu0 0.0
  %89 = vmatpush2.msra.mxu0 0.0
  %90 = vmatprep.subr.mxu0 0.0
  %91 = vmatpush2.msra.mxu0 0.0
  %92 = vmatprep.subr.mxu0 0.0
  %93 = vmatpush2.msra.mxu0 0.0
  %94 = vmatprep.mubr.f32.mxu0 0.0
  %95 = vmatmul.mubr.f32.gmra.mxu0 %v28
  %v96 = vpop.f32.mrf.mxu0
  %v97 = vadd.f32 %v24, %v96
  %v98 = vpop.f32.mrf.mxu0
  %99 = vdwg.mxu0
  %v100 = vmax.f32 %v97, 0.0
  %vm101 = vcmask 31744
  %102 = vst.msk [vmem:[%s3] sm:$0xff] %vm101, %v100
  // Predicated region
  $region14: #{encoder_forward.1} parent=0 // pred_check
    _
  $region15: #{encoder_forward.1} parent=0 // pred_check_branch
    %104 = sbr.rel (0) target = $region17
  $region16: #{encoder_forward.1} parent=0 // pred_region
    _
  $region17: #{encoder_forward.1} parent=0 // pred_fallthru
    _
  // Predicated region
  $region18: #{encoder_forward.1} parent=0 // pred_check
    _
  $region19: #{encoder_forward.1} parent=0 // pred_check_branch
    %106 = sbr.rel (0) target = $region21
  $region20: #{encoder_forward.1} parent=0 // pred_region
    _
  $region21: #{encoder_forward.1} parent=0 // pred_fallthru
    _

</llo_original>
